<compile_context>
chip_gen: v6e
topology: v6e:2x2x1
jax: 0.10.0
libtpu: 0.0.40
codegen_flags: <defaults>
</compile_context>

<pallas_src>
import functools

import jax
import jax.numpy as jnp
from jax.experimental import pallas as pl
from jax.experimental.pallas import tpu as pltpu


def _round_up(x, m):
    return ((x + m - 1) // m) * m


def _make_kernel(true_b, d):
    # Fold the 'mean' divisions into compile-time reciprocal multiplies.
    inv_t = 1.0 / float(true_b * 3)
    inv_q = 1.0 / float(true_b * (d - 3))

    def kernel(sax_ref, saq_ref, pred_ref, targ_ref, out_ref, acc_ref):
        # acc_ref: [D, 1] f32 running per-pose-dim |diff| sums (VMEM scratch).
        @pl.when(pl.program_id(0) == 0)
        def _init():
            acc_ref[...] = jnp.zeros_like(acc_ref)

        # Native-dtype load, f32 compute/accumulation (mandatory on v5e,
        # preserves accuracy on v6e/v7x).
        diff = pred_ref[...].astype(jnp.float32) - targ_ref[...].astype(jnp.float32)
        # Single lane-axis reduction per block; padded batch columns are zero
        # in both inputs, so they contribute nothing.
        acc_ref[...] += jnp.sum(jnp.abs(diff), axis=1, keepdims=True)

        @pl.when(pl.program_id(0) == pl.num_programs(0) - 1)
        def _finish():
            dim_sums = acc_ref[...]                                  # [D, 1]
            t_loss = jnp.sum(dim_sums[:3, :]) * jnp.float32(inv_t)   # static slice
            q_loss = jnp.sum(dim_sums[3:, :]) * jnp.float32(inv_q)
            sax = sax_ref[0]
            saq = saq_ref[0]
            loss = jnp.exp(-sax) * t_loss + sax + jnp.exp(-saq) * q_loss + saq
            out_ref[...] = jnp.full((1, 1), loss, dtype=jnp.float32)

    return kernel


@functools.partial(jax.jit, static_argnames=("block_batch",))
def atloc_criterion(pred, targ, sax=0.0, saq=0.0, *, block_batch=16384):
    """Pallas-backed AtLocCriterion forward.

    pred/targ: [B, D] with D > 3 (3 translation dims + D-3 rotation dims).
    sax/saq: scalars (the nn.Parameter betas).
    """
    assert pred.shape == targ.shape and pred.ndim == 2 and pred.shape[1] > 3
    B, D = pred.shape

    sax_a = jnp.asarray(sax, jnp.float32).reshape((1,))
    saq_a = jnp.asarray(saq, jnp.float32).reshape((1,))

    # Lane-dense layout: [D, B], batch on the 128-wide lane axis. Pad batch to
    # a multiple of the block size with zeros (zero diff -> no contribution).
    LANE = 128
    bb = _round_up(min(int(block_batch), _round_up(B, LANE)), LANE)
    B_pad = _round_up(B, bb)
    num_blocks = B_pad // bb

    pred_t = jnp.pad(pred.T, ((0, 0), (0, B_pad - B)))   # native dtype kept
    targ_t = jnp.pad(targ.T, ((0, 0), (0, B_pad - B)))

    out = pl.pallas_call(
        _make_kernel(B, D),
        out_shape=jax.ShapeDtypeStruct((1, 1), jnp.float32),
        grid=(num_blocks,),
        in_specs=[
            pl.BlockSpec(memory_space=pltpu.MemorySpace.SMEM),   # sax (1,)
            pl.BlockSpec(memory_space=pltpu.MemorySpace.SMEM),   # saq (1,)
            pl.BlockSpec((D, bb), lambda i: (0, i)),             # pred [D, B_pad]
            pl.BlockSpec((D, bb), lambda i: (0, i)),             # targ [D, B_pad]
        ],
        out_specs=pl.BlockSpec((1, 1), lambda i: (0, 0)),
        scratch_shapes=[pltpu.VMEM((D, 1), jnp.float32)],
        compiler_params=pltpu.CompilerParams(
            dimension_semantics=("arbitrary",)),
    )(sax_a, saq_a, pred_t, targ_t)
    return out[0, 0]


def _atloc_criterion_ref(pred, targ, sax, saq):
    pred = pred.astype(jnp.float32)
    targ = targ.astype(jnp.float32)
    t_loss = jnp.mean(jnp.abs(pred[:, :3] - targ[:, :3]))
    q_loss = jnp.mean(jnp.abs(pred[:, 3:] - targ[:, 3:]))
    return jnp.exp(-sax) * t_loss + sax + jnp.exp(-saq) * q_loss + saq


if __name__ == "__main__":
    key = jax.random.PRNGKey(0)
    kp, kt = jax.random.split(key)

    # 3 translation + 3 rotation (log-quaternion) dims, as in AtLoc.
    B, D = 8, 6
    pred = jax.random.normal(kp, (B, D), dtype=jnp.float32)
    targ = jax.random.normal(kt, (B, D), dtype=jnp.float32)

    # Default betas (sax=saq=0.0) and a non-trivial pair to exercise scalars.
    for sax, saq in [(0.0, 0.0), (-3.0, 0.5)]:
        out = jax.block_until_ready(atloc_criterion(pred, targ, sax, saq))
        ref = _atloc_criterion_ref(pred, targ, jnp.float32(sax), jnp.float32(saq))
        assert jnp.allclose(out, ref, rtol=1e-5, atol=1e-5), (out, ref)

    # Exercise the gridded accumulator path (multiple blocks + batch padding)
    # and the native-dtype (bf16) load path with f32 accumulation.
    B2 = 300
    kp2, kt2 = jax.random.split(jax.random.PRNGKey(1))
    pred2 = jax.random.normal(kp2, (B2, D), dtype=jnp.bfloat16)
    targ2 = jax.random.normal(kt2, (B2, D), dtype=jnp.bfloat16)
    out2 = jax.block_until_ready(
        atloc_criterion(pred2, targ2, -3.0, 0.5, block_batch=128))
    ref2 = _atloc_criterion_ref(pred2, targ2, jnp.float32(-3.0), jnp.float32(0.5))
    assert jnp.allclose(out2, ref2, rtol=1e-4, atol=1e-4), (out2, ref2)

    print("KERNEL_OK")
</pallas_src>

<mosaic_0001>
module attributes {stable_mosaic.version = 11 : i64} {
  func.func @kernel(%arg0: i32, %arg1: memref<1xf32, #tpu.memory_space<smem>>, %arg2: memref<1xf32, #tpu.memory_space<smem>>, %arg3: memref<6x128xf32, #tpu.memory_space<vmem>>, %arg4: memref<6x128xf32, #tpu.memory_space<vmem>>, %arg5: memref<1x1xf32, #tpu.memory_space<vmem>>, %arg6: memref<6x1xf32, #tpu.memory_space<vmem>>) attributes {dimension_semantics = [#tpu.dimension_semantics<arbitrary>], iteration_bounds = array<i64: 1>, scalar_prefetch = 0 : i64, scratch_operands = 1 : i64, tpu.core_type = #tpu.core_type<tc>, window_params = [{transform_indices = @transform_0, window_bounds = array<i64: 1>}, {transform_indices = @transform_1, window_bounds = array<i64: 1>}, {transform_indices = @transform_2, window_bounds = array<i64: 6, 128>}, {transform_indices = @transform_3, window_bounds = array<i64: 6, 128>}, {pipeline_mode = #tpu.pipeline_mode<synchronous>, transform_indices = @transform_4, window_bounds = array<i64: 1, 1>}]} {
    %c0_i32 = arith.constant 0 : i32
    %0 = arith.cmpi eq, %arg0, %c0_i32 : i32
    %1 = arith.extui %0 : i1 to i32
    %c0_i32_0 = arith.constant 0 : i32
    %2 = arith.cmpi ne, %1, %c0_i32_0 : i32
    scf.if %2 {
      %cst_10 = arith.constant 0.000000e+00 : f32
      %15 = vector.broadcast %cst_10 : f32 to vector<6x1xf32>
      %c0_11 = arith.constant 0 : index
      %c0_12 = arith.constant 0 : index
      %16 = vector.load %arg6[%c0_11, %c0_12] : memref<6x1xf32, #tpu.memory_space<vmem>>, vector<6x1xf32>
      tpu.vector_store %arg6[%c0_11, %c0_12], %15 {strides = array<i32>} : memref<6x1xf32, #tpu.memory_space<vmem>>, vector<6x1xf32>,
    } else {
    }
    %c0 = arith.constant 0 : index
    %c0_1 = arith.constant 0 : index
    %3 = vector.load %arg3[%c0, %c0_1] : memref<6x128xf32, #tpu.memory_space<vmem>>, vector<6x128xf32>
    %c0_2 = arith.constant 0 : index
    %c0_3 = arith.constant 0 : index
    %4 = vector.load %arg4[%c0_2, %c0_3] : memref<6x128xf32, #tpu.memory_space<vmem>>, vector<6x128xf32>
    %5 = arith.subf %3, %4 : vector<6x128xf32>
    %c0_4 = arith.constant 0 : index
    %c0_5 = arith.constant 0 : index
    %6 = vector.load %arg6[%c0_4, %c0_5] : memref<6x1xf32, #tpu.memory_space<vmem>>, vector<6x1xf32>
    %7 = math.absf %5 : vector<6x128xf32>
    %cst = arith.constant dense<0.000000e+00> : vector<6xf32>
    %8 = vector.multi_reduction <add>, %7, %cst [1] : vector<6x128xf32> to vector<6xf32>
    %9 = vector.shape_cast %8 : vector<6xf32> to vector<6x1xf32>
    %10 = arith.addf %6, %9 : vector<6x1xf32>
    %c0_6 = arith.constant 0 : index
    %c0_7 = arith.constant 0 : index
    %11 = vector.load %arg6[%c0_6, %c0_7] : memref<6x1xf32, #tpu.memory_space<vmem>>, vector<6x1xf32>
    tpu.vector_store %arg6[%c0_6, %c0_7], %10 {strides = array<i32>} : memref<6x1xf32, #tpu.memory_space<vmem>>, vector<6x1xf32>,
    %c0_i32_8 = arith.constant 0 : i32
    %12 = arith.cmpi eq, %arg0, %c0_i32_8 : i32
    %13 = arith.extui %12 : i1 to i32
    %c0_i32_9 = arith.constant 0 : i32
    %14 = arith.cmpi ne, %13, %c0_i32_9 : i32
    scf.if %14 {
      %c0_10 = arith.constant 0 : index
      %c0_11 = arith.constant 0 : index
      %15 = vector.load %arg6[%c0_10, %c0_11] : memref<6x1xf32, #tpu.memory_space<vmem>>, vector<6x1xf32>
      %16 = vector.extract_strided_slice %15 {offsets = [0, 0], sizes = [3, 1], strides = [1, 1]} : vector<6x1xf32> to vector<3x1xf32>
      %17 = vector.shape_cast %16 : vector<3x1xf32> to vector<1x3x1xf32>
      %cst_12 = arith.constant dense<0.000000e+00> : vector<1xf32>
      %18 = vector.multi_reduction <add>, %17, %cst_12 [1, 2] : vector<1x3x1xf32> to vector<1xf32>
      %19 = vector.shape_cast %18 : vector<1xf32> to vector<1x1x1xf32>
      %20 = vector.extract %19[0, 0, 0] : f32 from vector<1x1x1xf32>
      %cst_13 = arith.constant 0.0416666679 : f32
      %21 = arith.mulf %20, %cst_13 : f32
      %22 = vector.extract_strided_slice %15 {offsets = [3, 0], sizes = [3, 1], strides = [1, 1]} : vector<6x1xf32> to vector<3x1xf32>
      %23 = vector.shape_cast %22 : vector<3x1xf32> to vector<1x3x1xf32>
      %cst_14 = arith.constant dense<0.000000e+00> : vector<1xf32>
      %24 = vector.multi_reduction <add>, %23, %cst_14 [1, 2] : vector<1x3x1xf32> to vector<1xf32>
      %25 = vector.shape_cast %24 : vector<1xf32> to vector<1x1x1xf32>
      %26 = vector.extract %25[0, 0, 0] : f32 from vector<1x1x1xf32>
      %cst_15 = arith.constant 0.0416666679 : f32
      %27 = arith.mulf %26, %cst_15 : f32
      %c0_16 = arith.constant 0 : index
      %28 = memref.load %arg1[%c0_16] : memref<1xf32, #tpu.memory_space<smem>>
      %c0_17 = arith.constant 0 : index
      %29 = memref.load %arg2[%c0_17] : memref<1xf32, #tpu.memory_space<smem>>
      %cst_18 = arith.constant 0.000000e+00 : f32
      %30 = arith.subf %cst_18, %28 : f32
      %31 = math.exp %30 : f32
      %32 = arith.mulf %31, %21 : f32
      %33 = arith.addf %32, %28 : f32
      %cst_19 = arith.constant 0.000000e+00 : f32
      %34 = arith.subf %cst_19, %29 : f32
      %35 = math.exp %34 : f32
      %36 = arith.mulf %35, %27 : f32
      %37 = arith.addf %33, %36 : f32
      %38 = arith.addf %37, %29 : f32
      %39 = vector.broadcast %38 : f32 to vector<1x1xf32>
      %c0_20 = arith.constant 0 : index
      %c0_21 = arith.constant 0 : index
      %40 = vector.load %arg5[%c0_20, %c0_21] : memref<1x1xf32, #tpu.memory_space<vmem>>, vector<1x1xf32>
      tpu.vector_store %arg5[%c0_20, %c0_21], %39 {strides = array<i32>} : memref<1x1xf32, #tpu.memory_space<vmem>>, vector<1x1xf32>,
    } else {
    }
    return
  }
  func.func @transform_0(%arg0: i32) -> i32 {
    %c0_i32 = arith.constant 0 : i32
    %c0_i32_0 = arith.constant 0 : i32
    return %c0_i32 : i32
  }
  func.func @transform_1(%arg0: i32) -> i32 {
    %c0_i32 = arith.constant 0 : i32
    %c0_i32_0 = arith.constant 0 : i32
    return %c0_i32 : i32
  }
  func.func @transform_2(%arg0: i32) -> (i32, i32) {
    %c0_i32 = arith.constant 0 : i32
    %c0_i32_0 = arith.constant 0 : i32
    return %c0_i32, %arg0 : i32, i32
  }
  func.func @transform_3(%arg0: i32) -> (i32, i32) {
    %c0_i32 = arith.constant 0 : i32
    %c0_i32_0 = arith.constant 0 : i32
    return %c0_i32, %arg0 : i32, i32
  }
  func.func @transform_4(%arg0: i32) -> (i32, i32) {
    %c0_i32 = arith.constant 0 : i32
    %c0_i32_0 = arith.constant 0 : i32
    %c0_i32_1 = arith.constant 0 : i32
    return %c0_i32, %c0_i32_0 : i32, i32
  }
}

</mosaic_0001>

<llo_original>
// kernel: atloc_criterion.1
$region0: #{atloc_criterion.1}
  #allocation0 [shape = 'u32[]', space=smem, size = 0x4, offset = 0x4, fixed_abs, tag = 'smem constant byte address 0x4 - core index']
  #allocation1 [shape = 'u32[144,128]{1,0:T(1,128)}', space=vmem, size = 0x12000, scoped, tag = 'internal scratch']
  #allocation2 [shape = 'f32[6,1]{1,0:T(8,128)}', space=vmem, size = 0x1000, scoped, tag = 'scratch operand']
  #allocation3 [shape = 'f32[1]{0:T(128)S(6)}', space=smem, size = 0x200, scoped, tag = 'scoped memory for atloc_criterion.1']
  #allocation4 [shape = 'f32[1]{0:T(128)S(6)}', space=smem, size = 0x200, scoped, tag = 'scoped memory for atloc_criterion.1']
  %s0 = inlined_call_operand.<no memory space> [shape: f32[1], index: 0, kind: input, shape index: {}]
  %s1 = inlined_call_operand.<no memory space> [shape: f32[1], index: 1, kind: input, shape index: {}]
  %s2 = inlined_call_operand.vmem [shape: f32[6,128], index: 2, kind: input, shape index: {}]
  %s3 = inlined_call_operand.vmem [shape: f32[6,128], index: 3, kind: input, shape index: {}]
  %s4 = inlined_call_operand.hbm [shape: f32[1,1], index: 4, kind: output, shape index: {}]
  %s5 = sld [smem:[#allocation0]]
  $region34: #{atloc_criterion.1} parent=0
    _
  %s7 = ssub.s32 1, %s5
  %s8 = scalar_select 0, %s7, %s5
  %9 = sst [smem:[#allocation3]] %s0
  %10 = sst [smem:[#allocation4]] %s1
  $region1: #{atloc_criterion.1} parent=0
    #allocation5 [shape = 'u8[512]{0}', space=vmem, size = 0x400, scoped, tag = 'output window, operand 0, single buffered']
    #allocation6 [shape = 's32[1]{0}', space=sflag, size = 0x4, scoped, tag = 'scoped memory for atloc_criterion.1']
    %11 = vsyncpa [#allocation6], 0
    // Predicated region
    $region2: #{atloc_criterion.1} parent=1 // pred_check
      _
    $region3: #{atloc_criterion.1} parent=1 // pred_check_branch
      %13 = sbr.rel (0) target = $region5
    $region4: #{atloc_criterion.1} parent=1 // pred_region
      _
    $region5: #{atloc_criterion.1} parent=1 // pred_fallthru
      _
    // Predicated region
    $region6: #{atloc_criterion.1} parent=1 // pred_check
      _
    $region7: #{atloc_criterion.1} parent=1 // pred_check_branch
      %15 = sbr.rel (0) target = $region9
    $region8: #{atloc_criterion.1} parent=1 // pred_region
      _
    $region9: #{atloc_criterion.1} parent=1 // pred_fallthru
      _
    // Predicated region
    $region10: #{atloc_criterion.1} parent=1 // pred_check
      _
    $region11: #{atloc_criterion.1} parent=1 // pred_check_branch
      %17 = sbr.rel (0) target = $region13
    $region12: #{atloc_criterion.1} parent=1 // pred_region
      _
    $region13: #{atloc_criterion.1} parent=1 // pred_fallthru
      _
    // Predicated region
    $region14: #{atloc_criterion.1} parent=1 // pred_check
      _
    $region15: #{atloc_criterion.1} parent=1 // pred_check_branch
      %19 = sbr.rel (0) target = $region17
    $region16: #{atloc_criterion.1} parent=1 // pred_region
      _
    $region17: #{atloc_criterion.1} parent=1 // pred_fallthru
      _
    %p20 = scmp.eq.s32.totalorder 0, 0
    // Predicated region
    $region18: #{atloc_criterion.1} parent=1 // pred_check
      %p21 = pneg %p20
    $region19: #{atloc_criterion.1} parent=1 // pred_check_branch
      %23 = sbr.rel (%p21) target = $region21
    $region20: #{atloc_criterion.1} parent=1 // pred_region
      %vm24 = vcmask 5120
      %25 = vst.msk [vmem:[#allocation2] sm:$0x3f] %vm24, 0.0
    $region21: #{atloc_criterion.1} parent=1 // pred_fallthru
      _
    %v26 = vld [vmem:[%s2] sm:$0x3f]
    %v27 = vld [vmem:[%s3] sm:$0x3f]
    %v28 = vsub.f32 %v26, %v27
    %v29 = vld [vmem:[#allocation2] sm:$0x3f]
    %v30 = vand.u32 2147483647, %v28
    %vm31 = vcmask 1045504
    %v32 = vsel %vm31, %v30, 0.0
    %33 = vadd.xlane.f32.xlu0 %v32
    %v34 = vpop.xlane.xlu0 %33
    %v35 = vadd.f32 %v29, %v34
    %vm36 = vcmask 5120
    %37 = vst.msk [vmem:[#allocation2] sm:$0x3f] %vm36, %v35
    // Predicated region
    $region22: #{atloc_criterion.1} parent=1 // pred_check
      %p38 = pneg %p20
    $region23: #{atloc_criterion.1} parent=1 // pred_check_branch
      %40 = sbr.rel (%p38) target = $region25
    $region24: #{atloc_criterion.1} parent=1 // pred_region
      %v41 = vld [vmem:[#allocation2] sm:$0x3f]
      %vm42 = vcmask 2048
      %v43 = vsel %vm42, %v41, 0.0
      %44 = vadd.xlane.f32.xlu0 %v43
      %v45 = vpop.xlane.xlu0 %44
      %v46 = vrot.slane %v45, 4
      %v47 = vadd.f32 %v45, %v46
      %v48 = vrot.slane %v47, 2
      %v49 = vadd.f32 %v47, %v48
      %v50 = vrot.slane %v49, 1
      %v51 = vadd.f32 %v49, %v50
      %s52 = vtos %v51
      %s53 = smul.f32 %s52, 0.041666668
      %v55 = vrot.slane %v41, 3
      %v57 = vsel %vm42, %v55, 0.0
      %58 = vadd.xlane.f32.xlu0 %v57
      %v59 = vpop.xlane.xlu0 %58
      %v60 = vrot.slane %v59, 4
      %v61 = vadd.f32 %v59, %v60
      %v62 = vrot.slane %v61, 2
      %v63 = vadd.f32 %v61, %v62
      %v64 = vrot.slane %v63, 1
      %v65 = vadd.f32 %v63, %v64
      %s66 = vtos %v65
      %s67 = smul.f32 %s66, 0.041666668
      %s68 = sld [smem:[#allocation3]]
      %s69 = sld [smem:[#allocation4]]
      %s70 = ssub.f32 0.0, %s68
      %v71 = vstv %s70
      %v72 = vmul.f32 %v71, 1.442695
      %v73 = vpow.pop %v72
      %s74 = vtos %v73
      %s75 = smul.f32 %s74, %s53
      %s76 = sadd.f32 %s75, %s68
      %s77 = ssub.f32 0.0, %s69
      %v78 = vstv %s77
      %v79 = vmul.f32 %v78, 1.442695
      %v80 = vpow.pop %v79
      %s81 = vtos %v80
      %s82 = smul.f32 %s81, %s67
      %s83 = sadd.f32 %s76, %s82
      %s84 = sadd.f32 %s83, %s69
      %v85 = vstv %s84
      %vm86 = vcmask 0
      %87 = vst.msk [vmem:[#allocation5] sm:$0x1] %vm86, %v85
    $region25: #{atloc_criterion.1} parent=1 // pred_fallthru
      _
    // Predicated region
    $region26: #{atloc_criterion.1} parent=1 // pred_check
      _
    $region27: #{atloc_criterion.1} parent=1 // pred_check_branch
      %89 = sbr.rel (0) target = $region29
    $region28: #{atloc_criterion.1} parent=1 // pred_region
      %s91 = ssub.s32 16, 16
      %92 = vsyncadd [#allocation6], %s91
      %s94 = sshll.u32 [#allocation5], 4
      %s95 = int_to_ptr.vmem [resolvable:$true] %s94
      %97 = dma.vmem_to_hbm [thread:$0]  %s95, 16, %s4, [#allocation6]
    $region29: #{atloc_criterion.1} parent=1 // pred_fallthru
      _
    // Predicated region
    $region30: #{atloc_criterion.1} parent=1 // pred_check
      _
    $region31: #{atloc_criterion.1} parent=1 // pred_check_branch
      %99 = sbr.rel (0) target = $region33
    $region32: #{atloc_criterion.1} parent=1 // pred_region
      %100 = dma.done [#allocation6], 16
    $region33: #{atloc_criterion.1} parent=1 // pred_fallthru
      _
    %101 = vsyncpa [#allocation6], 1

</llo_original>
